<compile_context>
chip_gen: v5e
topology: v5e:2x2
jax: 0.10.0
libtpu: 0.0.40
codegen_flags: <defaults>
</compile_context>

<pallas_src>
import functools
import math

import jax
import jax.numpy as jnp
from jax.experimental import pallas as pl
from jax.experimental.pallas import tpu as pltpu


# ----------------------------- tiling config -----------------------------

# f32 tile caps.  Worst-case double-buffered footprint (tm=256, tk=1024,
# tn=512): x 2x1 MiB + (wmu_t, wsig_t) 2x2x2 MiB + eps_in ~1 MiB + out ~1 MiB
# ~= 13 MiB, well inside the 32 MiB scoped budget we request below and inside
# v7x's 64 MiB physical VMEM.
_TM_CAP = 256
_TK_CAP = 1024
_TN_CAP = 512
_VMEM_LIMIT_BYTES = 32 * 1024 * 1024


def _round_up(x, m):
    return (x + m - 1) // m * m


def _largest_aligned_divisor(dim, cap, align):
    """Largest multiple of `align` that divides `dim` and is <= cap."""
    cap = min(cap, dim)
    best = None
    t = align
    while t <= cap:
        if dim % t == 0:
            best = t
        t += align
    return best


def _pick_tiles(Mp, Kp, Np):
    tm = _largest_aligned_divisor(Mp, _TM_CAP, 8) or Mp
    tk = _largest_aligned_divisor(Kp, _TK_CAP, 128) or Kp
    tn = _largest_aligned_divisor(Np, _TN_CAP, 128) or Np
    # v7x has 2 TensorCores sharded over the "parallel" grid axes; make sure
    # the (M, N) grid has at least 2 blocks whenever the layer allows it.
    if (Mp // tm) * (Np // tn) == 1:
        if Np >= 256:
            tn = _largest_aligned_divisor(Np, Np // 2, 128) or tn
        elif Mp >= 16:
            tm = _largest_aligned_divisor(Mp, Mp // 2, 8) or tm
    return tm, tk, tn


# ------------------------------- kernels ---------------------------------

def _noisy_linear_train_kernel(x_ref, wmu_ref, wsig_ref, ein_ref, eout_ref,
                               bmu_ref, bsig_ref, beps_ref, o_ref,
                               *, bf16_matmul):
    """y = x @ (mu + sigma * (eps_out outer eps_in)).T + (bmu + bsig*beps).

    Weights arrive pre-transposed as (tk, tn) tiles, eps_in as a (tk, 1)
    column and eps_out as a (1, tn) row; the epsilon outer product is formed
    per-tile on the VPU (never streamed from HBM).  The output block is
    resident across the K grid axis, so we accumulate into o_ref directly.
    """
    k = pl.program_id(2)

    @pl.when(k == 0)
    def _():
        o_ref[...] = jnp.zeros_like(o_ref)

    # Fused noisy-weight construction in f32 (v5e has no bf16 VPU).
    w = wmu_ref[...] + wsig_ref[...] * (ein_ref[...] * eout_ref[...])  # (tk,tn)
    xv = x_ref[...]
    if bf16_matmul:
        xv = xv.astype(jnp.bfloat16)
        w = w.astype(jnp.bfloat16)
    o_ref[...] += jnp.dot(xv, w, preferred_element_type=jnp.float32)

    @pl.when(k == pl.num_programs(2) - 1)
    def _():
        o_ref[...] += bmu_ref[...] + bsig_ref[...] * beps_ref[...]     # (1,tn)


def _linear_eval_kernel(x_ref, wmu_ref, bmu_ref, o_ref, *, bf16_matmul):
    """Eval mode (or precomputed-noisy-weight mode): y = x @ w.T + b."""
    k = pl.program_id(2)

    @pl.when(k == 0)
    def _():
        o_ref[...] = jnp.zeros_like(o_ref)

    xv = x_ref[...]
    wv = wmu_ref[...]
    if bf16_matmul:
        xv = xv.astype(jnp.bfloat16)
        wv = wv.astype(jnp.bfloat16)
    o_ref[...] += jnp.dot(xv, wv, preferred_element_type=jnp.float32)

    @pl.when(k == pl.num_programs(2) - 1)
    def _():
        o_ref[...] += bmu_ref[...]


# ----------------------- parameter packing (once) ------------------------

def pack_noisy_linear_params(params):
    """Pad + pre-transpose parameters once (amortized until reset_noise)."""
    wmu = params["weight_mu"]
    N, K = wmu.shape
    Kp, Np = _round_up(K, 128), _round_up(N, 128)

    def pad_t(w):    # (N, K) -> padded (Kp, Np), transposed
        return jnp.pad(w.T, ((0, Kp - K), (0, Np - N)))

    def pad_row(v):  # (N,) -> (1, Np)
        return jnp.pad(v.reshape(1, N), ((0, 0), (0, Np - N)))

    return dict(
        wmu_t=pad_t(params["weight_mu"]),
        wsig_t=pad_t(params["weight_sigma"]),
        eps_in=jnp.pad(params["epsilon_in"].reshape(K, 1),
                       ((0, Kp - K), (0, 0))),
        eps_out=pad_row(params["epsilon_out"]),
        bmu=pad_row(params["bias_mu"]),
        bsig=pad_row(params["bias_sigma"]),
        beps=pad_row(params["bias_epsilon"]),
    )


# -------------------------------- forward --------------------------------

@functools.partial(jax.jit,
                   static_argnames=("out_features", "training", "bf16_matmul"))
def noisy_linear_forward(x, packed, *, out_features, training=True,
                         bf16_matmul=False):
    """Pallas NoisyLinear forward. x: (B, in_features), f32."""
    # TODO(synk): non-f32 outputs would need a separate f32 VMEM accumulator;
    # this path accumulates directly into the (f32) output block.
    B, K = x.shape
    Kp, Np = packed["wmu_t"].shape
    Mp = _round_up(B, 8)
    tm, tk, tn = _pick_tiles(Mp, Kp, Np)

    # Only x is padded per call; parameters were padded once at pack time.
    x_p = jnp.pad(x, ((0, Mp - B), (0, Kp - K)))

    grid = (Mp // tm, Np // tn, Kp // tk)

    x_spec = pl.BlockSpec((tm, tk), lambda i, j, k: (i, k))
    w_spec = pl.BlockSpec((tk, tn), lambda i, j, k: (k, j))
    ein_spec = pl.BlockSpec((tk, 1), lambda i, j, k: (k, 0))
    row_spec = pl.BlockSpec((1, tn), lambda i, j, k: (0, j))
    o_spec = pl.BlockSpec((tm, tn), lambda i, j, k: (i, j))

    cparams = pltpu.CompilerParams(
        dimension_semantics=("parallel", "parallel", "arbitrary"),
        vmem_limit_bytes=_VMEM_LIMIT_BYTES)

    if training:
        kernel = functools.partial(_noisy_linear_train_kernel,
                                   bf16_matmul=bf16_matmul)
        out_p = pl.pallas_call(
            kernel,
            out_shape=jax.ShapeDtypeStruct((Mp, Np), x.dtype),
            grid_spec=pltpu.PrefetchScalarGridSpec(
                num_scalar_prefetch=0,
                grid=grid,
                in_specs=[x_spec, w_spec, w_spec, ein_spec, row_spec,
                          row_spec, row_spec, row_spec],
                out_specs=o_spec),
            compiler_params=cparams,
        )(x_p, packed["wmu_t"], packed["wsig_t"], packed["eps_in"],
          packed["eps_out"], packed["bmu"], packed["bsig"], packed["beps"])
    else:
        kernel = functools.partial(_linear_eval_kernel,
                                   bf16_matmul=bf16_matmul)
        out_p = pl.pallas_call(
            kernel,
            out_shape=jax.ShapeDtypeStruct((Mp, Np), x.dtype),
            grid_spec=pltpu.PrefetchScalarGridSpec(
                num_scalar_prefetch=0,
                grid=grid,
                in_specs=[x_spec, w_spec, row_spec],
                out_specs=o_spec),
            compiler_params=cparams,
        )(x_p, packed["wmu_t"], packed["bmu"])

    return out_p[:B, :out_features]


# ----------------- parameter / noise construction (JAX) ------------------

def _scale_noise(key, size):
    """Factorized Gaussian noise: sign(x)*sqrt(|x|), clamped (as in the spec)."""
    x = jax.random.normal(key, (size,), dtype=jnp.float32)
    return jnp.clip(jnp.sign(x) * jnp.sqrt(jnp.abs(x)), -2.0, 2.0)


def init_noisy_linear(key, in_features, out_features, std_init=0.5):
    """reset_parameters() + reset_noise(), keeping epsilon factorized."""
    k_wmu, k_bmu, k_ein, k_eout = jax.random.split(key, 4)
    mu_range = 1.0 / math.sqrt(in_features)

    weight_mu = jax.random.uniform(
        k_wmu, (out_features, in_features), jnp.float32, -mu_range, mu_range)
    weight_sigma = jnp.full((out_features, in_features),
                            std_init / math.sqrt(in_features), jnp.float32)
    bias_mu = jax.random.uniform(
        k_bmu, (out_features,), jnp.float32, -mu_range, mu_range)
    bias_sigma = jnp.full((out_features,),
                          std_init / math.sqrt(out_features), jnp.float32)

    epsilon_in = _scale_noise(k_ein, in_features)
    epsilon_out = _scale_noise(k_eout, out_features)

    return dict(weight_mu=weight_mu, weight_sigma=weight_sigma,
                bias_mu=bias_mu, bias_sigma=bias_sigma,
                epsilon_in=epsilon_in, epsilon_out=epsilon_out,
                bias_epsilon=epsilon_out)


def _reference_forward(x, params, training=True):
    if training:
        weight_epsilon = jnp.outer(params["epsilon_out"], params["epsilon_in"])
        w = params["weight_mu"] + params["weight_sigma"] * weight_epsilon
        b = params["bias_mu"] + params["bias_sigma"] * params["bias_epsilon"]
    else:
        w, b = params["weight_mu"], params["bias_mu"]
    return x @ w.T + b


# --------------------------------- tests ---------------------------------

def _run_case(key, batch, in_features, out_features, bf16_matmul=False):
    k_param, k_x = jax.random.split(key)
    params = init_noisy_linear(k_param, in_features, out_features, std_init=0.5)
    packed = pack_noisy_linear_params(params)
    x = jax.random.normal(k_x, (batch, in_features), dtype=jnp.float32)

    y = jax.block_until_ready(noisy_linear_forward(
        x, packed, out_features=out_features, training=True,
        bf16_matmul=bf16_matmul))
    y_eval = jax.block_until_ready(noisy_linear_forward(
        x, packed, out_features=out_features, training=False,
        bf16_matmul=bf16_matmul))

    y_ref = _reference_forward(x, params, training=True)
    y_eval_ref = _reference_forward(x, params, training=False)

    tol = 2e-2 if bf16_matmul else 1e-3
    assert y.shape == (batch, out_features)
    assert jnp.allclose(y, y_ref, atol=tol, rtol=tol)
    assert jnp.allclose(y_eval, y_eval_ref, atol=tol, rtol=tol)


if __name__ == "__main__":
    key = jax.random.PRNGKey(0)
    k_a, k_b, k_c = jax.random.split(key, 3)

    # Case A: small, ragged dims; exercises padding + the v7x grid-split guard
    # (single M block -> N tile split so both TensorCores get work).
    _run_case(k_a, batch=8, in_features=192, out_features=320)
    # Case B: multiple K and N blocks; exercises the resident-output
    # accumulate / init / bias-finalize path with tk=1024 tiles.
    _run_case(k_b, batch=16, in_features=2048, out_features=640)
    # Case C: bf16 MXU operands (f32 accumulation), looser tolerance.
    _run_case(k_c, batch=16, in_features=1024, out_features=256,
              bf16_matmul=True)

    print("KERNEL_OK")
</pallas_src>

<mosaic_0001>
module attributes {stable_mosaic.version = 11 : i64} {
  func.func @_noisy_linear_train_kernel(%arg0: i32, %arg1: i32, %arg2: i32, %arg3: memref<8x256xf32, #tpu.memory_space<vmem>>, %arg4: memref<256x128xf32, #tpu.memory_space<vmem>>, %arg5: memref<256x128xf32, #tpu.memory_space<vmem>>, %arg6: memref<256x1xf32, #tpu.memory_space<vmem>>, %arg7: memref<1x128xf32, #tpu.memory_space<vmem>>, %arg8: memref<1x128xf32, #tpu.memory_space<vmem>>, %arg9: memref<1x128xf32, #tpu.memory_space<vmem>>, %arg10: memref<1x128xf32, #tpu.memory_space<vmem>>, %arg11: memref<8x128xf32, #tpu.memory_space<vmem>>) attributes {dimension_semantics = [#tpu.dimension_semantics<parallel>, #tpu.dimension_semantics<parallel>, #tpu.dimension_semantics<arbitrary>], iteration_bounds = array<i64: 1, 3, 1>, scalar_prefetch = 0 : i64, scratch_operands = 0 : i64, tpu.core_type = #tpu.core_type<tc>, window_params = [{transform_indices = @transform_0, window_bounds = array<i64: 8, 256>}, {transform_indices = @transform_1, window_bounds = array<i64: 256, 128>}, {transform_indices = @transform_2, window_bounds = array<i64: 256, 128>}, {transform_indices = @transform_3, window_bounds = array<i64: 256, 1>}, {transform_indices = @transform_4, window_bounds = array<i64: 1, 128>}, {transform_indices = @transform_5, window_bounds = array<i64: 1, 128>}, {transform_indices = @transform_6, window_bounds = array<i64: 1, 128>}, {transform_indices = @transform_7, window_bounds = array<i64: 1, 128>}, {transform_indices = @transform_8, window_bounds = array<i64: 8, 128>}]} {
    %c0_i32 = arith.constant 0 : i32
    %0 = arith.cmpi eq, %arg2, %c0_i32 : i32
    %1 = arith.extui %0 : i1 to i32
    %c0_i32_0 = arith.constant 0 : i32
    %2 = arith.cmpi ne, %1, %c0_i32_0 : i32
    scf.if %2 {
      %cst_16 = arith.constant 0.000000e+00 : f32
      %20 = vector.broadcast %cst_16 : f32 to vector<8x128xf32>
      %c0_17 = arith.constant 0 : index
      %c0_18 = arith.constant 0 : index
      %21 = vector.load %arg11[%c0_17, %c0_18] : memref<8x128xf32, #tpu.memory_space<vmem>>, vector<8x128xf32>
      tpu.vector_store %arg11[%c0_17, %c0_18], %20 {strides = array<i32>} : memref<8x128xf32, #tpu.memory_space<vmem>>, vector<8x128xf32>,
    } else {
    }
    %c0 = arith.constant 0 : index
    %c0_1 = arith.constant 0 : index
    %3 = vector.load %arg4[%c0, %c0_1] : memref<256x128xf32, #tpu.memory_space<vmem>>, vector<256x128xf32>
    %c0_2 = arith.constant 0 : index
    %c0_3 = arith.constant 0 : index
    %4 = vector.load %arg5[%c0_2, %c0_3] : memref<256x128xf32, #tpu.memory_space<vmem>>, vector<256x128xf32>
    %c0_4 = arith.constant 0 : index
    %c0_5 = arith.constant 0 : index
    %5 = vector.load %arg6[%c0_4, %c0_5] : memref<256x1xf32, #tpu.memory_space<vmem>>, vector<256x1xf32>
    %c0_6 = arith.constant 0 : index
    %c0_7 = arith.constant 0 : index
    %6 = vector.load %arg7[%c0_6, %c0_7] : memref<1x128xf32, #tpu.memory_space<vmem>>, vector<1x128xf32>
    %7 = vector.broadcast %5 : vector<256x1xf32> to vector<256x128xf32>
    %8 = vector.broadcast %6 : vector<1x128xf32> to vector<256x128xf32>
    %9 = arith.mulf %7, %8 : vector<256x128xf32>
    %10 = arith.mulf %4, %9 : vector<256x128xf32>
    %11 = arith.addf %3, %10 : vector<256x128xf32>
    %c0_8 = arith.constant 0 : index
    %c0_9 = arith.constant 0 : index
    %12 = vector.load %arg3[%c0_8, %c0_9] : memref<8x256xf32, #tpu.memory_space<vmem>>, vector<8x256xf32>
    %c0_10 = arith.constant 0 : index
    %c0_11 = arith.constant 0 : index
    %13 = vector.load %arg11[%c0_10, %c0_11] : memref<8x128xf32, #tpu.memory_space<vmem>>, vector<8x128xf32>
    %cst = arith.constant dense<0.000000e+00> : vector<8x128xf32>
    %14 = tpu.matmul %12, %11, %cst {dimension_numbers = #tpu.dot_dimension_numbers<[1], [0], [0], [1], [0, 0, 1, 1], [], []>} : vector<8x256xf32>, vector<256x128xf32>, vector<8x128xf32> -> vector<8x128xf32>
    %15 = arith.addf %13, %14 : vector<8x128xf32>
    %c0_12 = arith.constant 0 : index
    %c0_13 = arith.constant 0 : index
    %16 = vector.load %arg11[%c0_12, %c0_13] : memref<8x128xf32, #tpu.memory_space<vmem>>, vector<8x128xf32>
    tpu.vector_store %arg11[%c0_12, %c0_13], %15 {strides = array<i32>} : memref<8x128xf32, #tpu.memory_space<vmem>>, vector<8x128xf32>,
    %c0_i32_14 = arith.constant 0 : i32
    %17 = arith.cmpi eq, %arg2, %c0_i32_14 : i32
    %18 = arith.extui %17 : i1 to i32
    %c0_i32_15 = arith.constant 0 : i32
    %19 = arith.cmpi ne, %18, %c0_i32_15 : i32
    scf.if %19 {
      %c0_16 = arith.constant 0 : index
      %c0_17 = arith.constant 0 : index
      %20 = vector.load %arg11[%c0_16, %c0_17] : memref<8x128xf32, #tpu.memory_space<vmem>>, vector<8x128xf32>
      %c0_18 = arith.constant 0 : index
      %c0_19 = arith.constant 0 : index
      %21 = vector.load %arg8[%c0_18, %c0_19] : memref<1x128xf32, #tpu.memory_space<vmem>>, vector<1x128xf32>
      %c0_20 = arith.constant 0 : index
      %c0_21 = arith.constant 0 : index
      %22 = vector.load %arg9[%c0_20, %c0_21] : memref<1x128xf32, #tpu.memory_space<vmem>>, vector<1x128xf32>
      %c0_22 = arith.constant 0 : index
      %c0_23 = arith.constant 0 : index
      %23 = vector.load %arg10[%c0_22, %c0_23] : memref<1x128xf32, #tpu.memory_space<vmem>>, vector<1x128xf32>
      %24 = arith.mulf %22, %23 : vector<1x128xf32>
      %25 = arith.addf %21, %24 : vector<1x128xf32>
      %26 = vector.broadcast %25 : vector<1x128xf32> to vector<8x128xf32>
      %27 = arith.addf %20, %26 : vector<8x128xf32>
      %c0_24 = arith.constant 0 : index
      %c0_25 = arith.constant 0 : index
      %28 = vector.load %arg11[%c0_24, %c0_25] : memref<8x128xf32, #tpu.memory_space<vmem>>, vector<8x128xf32>
      tpu.vector_store %arg11[%c0_24, %c0_25], %27 {strides = array<i32>} : memref<8x128xf32, #tpu.memory_space<vmem>>, vector<8x128xf32>,
    } else {
    }
    return
  }
  func.func @transform_0(%arg0: i32, %arg1: i32, %arg2: i32) -> (i32, i32) {
    %c0_i32 = arith.constant 0 : i32
    return %arg0, %arg2 : i32, i32
  }
  func.func @transform_1(%arg0: i32, %arg1: i32, %arg2: i32) -> (i32, i32) {
    %c0_i32 = arith.constant 0 : i32
    return %arg2, %arg1 : i32, i32
  }
  func.func @transform_2(%arg0: i32, %arg1: i32, %arg2: i32) -> (i32, i32) {
    %c0_i32 = arith.constant 0 : i32
    return %arg2, %arg1 : i32, i32
  }
  func.func @transform_3(%arg0: i32, %arg1: i32, %arg2: i32) -> (i32, i32) {
    %c0_i32 = arith.constant 0 : i32
    %c0_i32_0 = arith.constant 0 : i32
    return %arg2, %c0_i32 : i32, i32
  }
  func.func @transform_4(%arg0: i32, %arg1: i32, %arg2: i32) -> (i32, i32) {
    %c0_i32 = arith.constant 0 : i32
    %c0_i32_0 = arith.constant 0 : i32
    return %c0_i32, %arg1 : i32, i32
  }
  func.func @transform_5(%arg0: i32, %arg1: i32, %arg2: i32) -> (i32, i32) {
    %c0_i32 = arith.constant 0 : i32
    %c0_i32_0 = arith.constant 0 : i32
    return %c0_i32, %arg1 : i32, i32
  }
  func.func @transform_6(%arg0: i32, %arg1: i32, %arg2: i32) -> (i32, i32) {
    %c0_i32 = arith.constant 0 : i32
    %c0_i32_0 = arith.constant 0 : i32
    return %c0_i32, %arg1 : i32, i32
  }
  func.func @transform_7(%arg0: i32, %arg1: i32, %arg2: i32) -> (i32, i32) {
    %c0_i32 = arith.constant 0 : i32
    %c0_i32_0 = arith.constant 0 : i32
    return %c0_i32, %arg1 : i32, i32
  }
  func.func @transform_8(%arg0: i32, %arg1: i32, %arg2: i32) -> (i32, i32) {
    %c0_i32 = arith.constant 0 : i32
    return %arg0, %arg1 : i32, i32
  }
}

</mosaic_0001>

<llo_original>
// kernel: noisy_linear_forward.1
$region0: #{noisy_linear_forward.1}
  #allocation0 [shape = 'u32[]', space=smem, size = 0x4, offset = 0x4, fixed_abs, tag = 'smem constant byte address 0x4 - core index']
  #allocation1 [shape = 'u32[72,128]{1,0:T(1,128)}', space=vmem, size = 0x9000, scoped, tag = 'internal scratch']
  %s0 = inlined_call_operand.vmem [shape: f32[8,256], index: 0, kind: input, shape index: {}]
  %s1 = inlined_call_operand.hbm [shape: f32[256,384], index: 1, kind: input, shape index: {}]
  %s2 = inlined_call_operand.hbm [shape: f32[256,384], index: 2, kind: input, shape index: {}]
  %s3 = inlined_call_operand.vmem [shape: f32[256,1], index: 3, kind: input, shape index: {}]
  %s4 = inlined_call_operand.vmem [shape: f32[1,384], index: 4, kind: input, shape index: {}]
  %s5 = inlined_call_operand.vmem [shape: f32[1,384], index: 5, kind: input, shape index: {}]
  %s6 = inlined_call_operand.vmem [shape: f32[1,384], index: 6, kind: input, shape index: {}]
  %s7 = inlined_call_operand.vmem [shape: f32[1,384], index: 7, kind: input, shape index: {}]
  %s8 = inlined_call_operand.hbm [shape: f32[8,384], index: 8, kind: output, shape index: {}]
  %s9 = sld [smem:[#allocation0]]
  $region81: #{noisy_linear_forward.1} parent=0
    _
  %s11 = ssub.s32 1, %s9
  %s12 = scalar_select 0, %s11, %s9
  $region1: #{noisy_linear_forward.1} parent=0
    #allocation2 [shape = 'u8[262144]{0}', space=vmem, size = 0x40000, scoped, tag = 'input window, operand 1']
    #allocation3 [shape = 's32[2]{0}', space=sflag, size = 0x8, scoped, tag = 'scoped memory for noisy_linear_forward.1']
    #allocation4 [shape = 's32[2]{0}', space=sflag, size = 0x8, scoped, tag = 'scoped memory for noisy_linear_forward.1']
    #allocation5 [shape = 'u8[262144]{0}', space=vmem, size = 0x40000, scoped, tag = 'input window, operand 2']
    #allocation6 [shape = 's32[2]{0}', space=sflag, size = 0x8, scoped, tag = 'scoped memory for noisy_linear_forward.1']
    #allocation7 [shape = 'u8[8192]{0}', space=vmem, size = 0x2000, scoped, tag = 'output window, operand 0']
    %13 = vsyncpa [#allocation3], 0
    %s14 = scalar_lea.sflag [#allocation3], 1
    %15 = vsyncpa %s14, 0
    %16 = vsyncpa [#allocation6], 0
    %s17 = scalar_lea.sflag [#allocation6], 1
    %18 = vsyncpa %s17, 0
    %19 = vsyncpa [#allocation4], 0
    %s20 = scalar_lea.sflag [#allocation4], 1
    %21 = vsyncpa %s20, 0
    loop: start=0, step=1, limit=5
    $region2: #{noisy_linear_forward.1} parent=1 // loop_pre_header
      _
    $region3: #{noisy_linear_forward.1} parent=1 // loop_header
      %s23 = sphi 0, %s27
      %p24 = scmp.ge.s32.totalorder %s23, 5
      %s30 = sphi 0, %s49
      %s31 = sphi 0, %s45
      %s32 = sphi 0, %s41
      %s33 = sphi 0, %s30
      %s34 = sphi 0, %s31
      %s35 = sphi 0, %s32
      %s36 = sphi 0, %s33
      %s37 = sphi 0, %s34
      %s38 = sphi 0, %s35
      %s54 = sphi 0, %s56
      %s57 = sphi 0, %s54
      %s58 = sphi 0, %s57
      %s74 = sphi 0, %s58
      %s82 = sphi 0, %s84
      %s85 = sphi 0, %s82
      %s86 = sphi 0, %s85
      %s102 = sphi 0, %s86
      %s110 = sphi 0, %s112
      %s113 = sphi 0, %s110
      %s114 = sphi 0, %s113
      %s130 = sphi 0, %s114
      %s136 = sphi 0, %s138
      %s139 = sphi 0, %s136
      %s140 = sphi 0, %s139
      %s156 = sphi 0, %s140
      %s162 = sphi 0, %s164
      %s165 = sphi 0, %s162
      %s166 = sphi 0, %s165
      %s182 = sphi 0, %s166
      %s188 = sphi 0, %s190
      %s191 = sphi 0, %s188
      %s192 = sphi 0, %s191
      %s208 = sphi 0, %s192
      %s214 = sphi 0, %s216
      %s217 = sphi 0, %s214
      %s218 = sphi 0, %s217
      %s234 = sphi 0, %s218
      %s240 = sphi 0, %s242
      %s243 = sphi 0, %s240
      %s244 = sphi 0, %s243
      %s260 = sphi 0, %s244
      %s268 = sphi 0, %s270
      %s271 = sphi 0, %s268
      %s272 = sphi 0, %s271
      %s288 = sphi 0, %s272
    $region4: #{noisy_linear_forward.1} parent=1 // loop_header_branch
      %26 = sbr.rel (%p24) target = $region8
    $region5: #{noisy_linear_forward.1} parent=1 // loop_body
      %s28 = ssub.s32 %s23, 1
      %s29 = ssub.s32 %s23, 2
      %s39 = sadd.s32 1, %s32
      %p40 = scmp.ge.s32.totalorder %s39, 1
      %s41 = scalar_select %p40, 0, %s39
      %s42 = sadd.s32 1, %s31
      %s43 = scalar_select %p40, %s42, %s31
      %p44 = scmp.ge.s32.totalorder %s43, 3
      %s45 = scalar_select %p44, 0, %s43
      %s46 = sadd.s32 1, %s30
      %s47 = scalar_select %p44, %s46, %s30
      %p48 = scmp.ge.s32.totalorder %s47, 1
      %s49 = scalar_select %p48, 0, %s47
      %s50 = ssub.s32 %s30, %s49
      %s51 = ssub.s32 %s32, %s41
      %s52 = sor.u32 %s50, %s51
      %p53 = scmp.eq.s32.totalorder %s52, 0
      %s55 = sadd.s32 %s54, 1
      %s56 = scalar_select %p53, %s54, %s55
      %p59 = pneg %p53
      %p60 = scmp.eq.s32.totalorder %s23, 2
      %p61 = por %p59, %p60
      %p62 = scmp.ne.s32.totalorder %s54, %s57
      %p63 = scmp.eq.s32.totalorder %s23, 0
      %p64 = por %p62, %p63
      %p65 = scmp.ne.s32.totalorder %s54, %s57
      %p66 = scmp.eq.s32.totalorder %s28, 2
      %p67 = por %p65, %p66
      %p68 = scmp.ne.s32.totalorder %s57, %s58
      %p69 = scmp.eq.s32.totalorder %s28, 0
      %p70 = por %p68, %p69
      %p71 = scmp.ne.s32.totalorder %s57, %s58
      %p72 = scmp.eq.s32.totalorder %s29, 2
      %p73 = por %p71, %p72
      %p75 = scmp.ne.s32.totalorder %s58, %s74
      %p76 = scmp.eq.s32.totalorder %s29, 0
      %p77 = por %p75, %p76
      %s78 = ssub.s32 %s32, %s41
      %s79 = ssub.s32 %s31, %s45
      %s80 = sor.u32 %s78, %s79
      %p81 = scmp.eq.s32.totalorder %s80, 0
      %s83 = sadd.s32 %s82, 1
      %s84 = scalar_select %p81, %s82, %s83
      %p87 = pneg %p81
      %p88 = scmp.eq.s32.totalorder %s23, 2
      %p89 = por %p87, %p88
      %p90 = scmp.ne.s32.totalorder %s82, %s85
      %p91 = scmp.eq.s32.totalorder %s23, 0
      %p92 = por %p90, %p91
      %p93 = scmp.ne.s32.totalorder %s82, %s85
      %p94 = scmp.eq.s32.totalorder %s28, 2
      %p95 = por %p93, %p94
      %p96 = scmp.ne.s32.totalorder %s85, %s86
      %p97 = scmp.eq.s32.totalorder %s28, 0
      %p98 = por %p96, %p97
      %p99 = scmp.ne.s32.totalorder %s85, %s86
      %p100 = scmp.eq.s32.totalorder %s29, 2
      %p101 = por %p99, %p100
      %p103 = scmp.ne.s32.totalorder %s86, %s102
      %p104 = scmp.eq.s32.totalorder %s29, 0
      %p105 = por %p103, %p104
      %s106 = ssub.s32 %s32, %s41
      %s107 = ssub.s32 %s31, %s45
      %s108 = sor.u32 %s106, %s107
      %p109 = scmp.eq.s32.totalorder %s108, 0
      %s111 = sadd.s32 %s110, 1
      %s112 = scalar_select %p109, %s110, %s111
      %p115 = pneg %p109
      %p116 = scmp.eq.s32.totalorder %s23, 2
      %p117 = por %p115, %p116
      %p118 = scmp.ne.s32.totalorder %s110, %s113
      %p119 = scmp.eq.s32.totalorder %s23, 0
      %p120 = por %p118, %p119
      %p121 = scmp.ne.s32.totalorder %s110, %s113
      %p122 = scmp.eq.s32.totalorder %s28, 2
      %p123 = por %p121, %p122
      %p124 = scmp.ne.s32.totalorder %s113, %s114
      %p125 = scmp.eq.s32.totalorder %s28, 0
      %p126 = por %p124, %p125
      %p127 = scmp.ne.s32.totalorder %s113, %s114
      %p128 = scmp.eq.s32.totalorder %s29, 2
      %p129 = por %p127, %p128
      %p131 = scmp.ne.s32.totalorder %s114, %s130
      %p132 = scmp.eq.s32.totalorder %s29, 0
      %p133 = por %p131, %p132
      %s134 = ssub.s32 %s32, %s41
      %p135 = scmp.eq.s32.totalorder %s134, 0
      %s137 = sadd.s32 %s136, 1
      %s138 = scalar_select %p135, %s136, %s137
      %p141 = pneg %p135
      %p142 = scmp.eq.s32.totalorder %s23, 2
      %p143 = por %p141, %p142
      %p144 = scmp.ne.s32.totalorder %s136, %s139
      %p145 = scmp.eq.s32.totalorder %s23, 0
      %p146 = por %p144, %p145
      %p147 = scmp.ne.s32.totalorder %s136, %s139
      %p148 = scmp.eq.s32.totalorder %s28, 2
      %p149 = por %p147, %p148
      %p150 = scmp.ne.s32.totalorder %s139, %s140
      %p151 = scmp.eq.s32.totalorder %s28, 0
      %p152 = por %p150, %p151
      %p153 = scmp.ne.s32.totalorder %s139, %s140
      %p154 = scmp.eq.s32.totalorder %s29, 2
      %p155 = por %p153, %p154
      %p157 = scmp.ne.s32.totalorder %s140, %s156
      %p158 = scmp.eq.s32.totalorder %s29, 0
      %p159 = por %p157, %p158
      %s160 = ssub.s32 %s31, %s45
      %p161 = scmp.eq.s32.totalorder %s160, 0
      %s163 = sadd.s32 %s162, 1
      %s164 = scalar_select %p161, %s162, %s163
      %p167 = pneg %p161
      %p168 = scmp.eq.s32.totalorder %s23, 2
      %p169 = por %p167, %p168
      %p170 = scmp.ne.s32.totalorder %s162, %s165
      %p171 = scmp.eq.s32.totalorder %s23, 0
      %p172 = por %p170, %p171
      %p173 = scmp.ne.s32.totalorder %s162, %s165
      %p174 = scmp.eq.s32.totalorder %s28, 2
      %p175 = por %p173, %p174
      %p176 = scmp.ne.s32.totalorder %s165, %s166
      %p177 = scmp.eq.s32.totalorder %s28, 0
      %p178 = por %p176, %p177
      %p179 = scmp.ne.s32.totalorder %s165, %s166
      %p180 = scmp.eq.s32.totalorder %s29, 2
      %p181 = por %p179, %p180
      %p183 = scmp.ne.s32.totalorder %s166, %s182
      %p184 = scmp.eq.s32.totalorder %s29, 0
      %p185 = por %p183, %p184
      %s186 = ssub.s32 %s31, %s45
      %p187 = scmp.eq.s32.totalorder %s186, 0
      %s189 = sadd.s32 %s188, 1
      %s190 = scalar_select %p187, %s188, %s189
      %p193 = pneg %p187
      %p194 = scmp.eq.s32.totalorder %s23, 2
      %p195 = por %p193, %p194
      %p196 = scmp.ne.s32.totalorder %s188, %s191
      %p197 = scmp.eq.s32.totalorder %s23, 0
      %p198 = por %p196, %p197
      %p199 = scmp.ne.s32.totalorder %s188, %s191
      %p200 = scmp.eq.s32.totalorder %s28, 2
      %p201 = por %p199, %p200
      %p202 = scmp.ne.s32.totalorder %s191, %s192
      %p203 = scmp.eq.s32.totalorder %s28, 0
      %p204 = por %p202, %p203
      %p205 = scmp.ne.s32.totalorder %s191, %s192
      %p206 = scmp.eq.s32.totalorder %s29, 2
      %p207 = por %p205, %p206
      %p209 = scmp.ne.s32.totalorder %s192, %s208
      %p210 = scmp.eq.s32.totalorder %s29, 0
      %p211 = por %p209, %p210
      %s212 = ssub.s32 %s31, %s45
      %p213 = scmp.eq.s32.totalorder %s212, 0
      %s215 = sadd.s32 %s214, 1
      %s216 = scalar_select %p213, %s214, %s215
      %p219 = pneg %p213
      %p220 = scmp.eq.s32.totalorder %s23, 2
      %p221 = por %p219, %p220
      %p222 = scmp.ne.s32.totalorder %s214, %s217
      %p223 = scmp.eq.s32.totalorder %s23, 0
      %p224 = por %p222, %p223
      %p225 = scmp.ne.s32.totalorder %s214, %s217
      %p226 = scmp.eq.s32.totalorder %s28, 2
      %p227 = por %p225, %p226
      %p228 = scmp.ne.s32.totalorder %s217, %s218
      %p229 = scmp.eq.s32.totalorder %s28, 0
      %p230 = por %p228, %p229
      %p231 = scmp.ne.s32.totalorder %s217, %s218
      %p232 = scmp.eq.s32.totalorder %s29, 2
      %p233 = por %p231, %p232
      %p235 = scmp.ne.s32.totalorder %s218, %s234
      %p236 = scmp.eq.s32.totalorder %s29, 0
      %p237 = por %p235, %p236
      %s238 = ssub.s32 %s31, %s45
      %p239 = scmp.eq.s32.totalorder %s238, 0
      %s241 = sadd.s32 %s240, 1
      %s242 = scalar_select %p239, %s240, %s241
      %p245 = pneg %p239
      %p246 = scmp.eq.s32.totalorder %s23, 2
      %p247 = por %p245, %p246
      %p248 = scmp.ne.s32.totalorder %s240, %s243
      %p249 = scmp.eq.s32.totalorder %s23, 0
      %p250 = por %p248, %p249
      %p251 = scmp.ne.s32.totalorder %s240, %s243
      %p252 = scmp.eq.s32.totalorder %s28, 2
      %p253 = por %p251, %p252
      %p254 = scmp.ne.s32.totalorder %s243, %s244
      %p255 = scmp.eq.s32.totalorder %s28, 0
      %p256 = por %p254, %p255
      %p257 = scmp.ne.s32.totalorder %s243, %s244
      %p258 = scmp.eq.s32.totalorder %s29, 2
      %p259 = por %p257, %p258
      %p261 = scmp.ne.s32.totalorder %s244, %s260
      %p262 = scmp.eq.s32.totalorder %s29, 0
      %p263 = por %p261, %p262
      %s264 = ssub.s32 %s30, %s49
      %s265 = ssub.s32 %s31, %s45
      %s266 = sor.u32 %s264, %s265
      %p267 = scmp.eq.s32.totalorder %s266, 0
      %s269 = sadd.s32 %s268, 1
      %s270 = scalar_select %p267, %s268, %s269
      %p273 = pneg %p267
      %p274 = scmp.eq.s32.totalorder %s23, 2
      %p275 = por %p273, %p274
      %p276 = scmp.ne.s32.totalorder %s268, %s271
      %p277 = scmp.eq.s32.totalorder %s23, 0
      %p278 = por %p276, %p277
      %p279 = scmp.ne.s32.totalorder %s268, %s271
      %p280 = scmp.eq.s32.totalorder %s28, 2
      %p281 = por %p279, %p280
      %p282 = scmp.ne.s32.totalorder %s271, %s272
      %p283 = scmp.eq.s32.totalorder %s28, 0
      %p284 = por %p282, %p283
      %p285 = scmp.ne.s32.totalorder %s271, %s272
      %p286 = scmp.eq.s32.totalorder %s29, 2
      %p287 = por %p285, %p286
      %p289 = scmp.ne.s32.totalorder %s272, %s288
      %p290 = scmp.eq.s32.totalorder %s29, 0
      %p291 = por %p289, %p290
      %p292 = scmp.le.s32.totalorder 1, %s23
      %p293 = scmp.lt.s32.totalorder %s23, 4
      %p294 = pnand %p292, %p293
      %p295 = pneg %p294
      // Predicated region
      $region9: #{noisy_linear_forward.1} parent=5 // pred_check
        _
      $region10: #{noisy_linear_forward.1} parent=5 // pred_check_branch
        %297 = sbr.rel (%p294) target = $region12
      $region11: #{noisy_linear_forward.1} parent=5 // pred_region
        %s298 = ssub.s32 %s23, 1
        // Predicated region
        $region13: #{noisy_linear_forward.1} parent=11 // pred_check
          %p299 = pneg %p70
        $region14: #{noisy_linear_forward.1} parent=11 // pred_check_branch
          %301 = sbr.rel (%p299) target = $region16
        $region15: #{noisy_linear_forward.1} parent=11 // pred_region
          %s302 = smul.u32 2, %s35
          %p303 = scmp.lt.s32.totalorder %s33, 0
          %s304 = scalar_select %p303, %s33, 0
          %p305 = scmp.lt.s32.totalorder %s302, 1
          %s306 = scalar_select %p305, %s302, 1
          %s307 = smul.addr %s304, 2
          %s308 = sadd.s32 %s306, %s307
          %s309 = smul.addr %s308, 8
          %s310 = scalar_lea.vmem %s0, %s309
          %s311 = smul.u32 2, %s35
        $region16: #{noisy_linear_forward.1} parent=11 // pred_fallthru
          _
        // Predicated region
        $region17: #{noisy_linear_forward.1} parent=11 // pred_check
          %p312 = pneg %p152
        $region18: #{noisy_linear_forward.1} parent=11 // pred_check_branch
          %314 = sbr.rel (%p312) target = $region20
        $region19: #{noisy_linear_forward.1} parent=11 // pred_region
          %s315 = smul.u32 32, %s35
          %p316 = scmp.lt.s32.totalorder %s315, 31
          %s317 = scalar_select %p316, %s315, 31
          %s318 = smul.addr %s317, 8
          %s319 = scalar_lea.vmem %s3, %s318
          %s320 = smul.u32 32, %s35
        $region20: #{noisy_linear_forward.1} parent=11 // pred_fallthru
          _
      $region12: #{noisy_linear_forward.1} parent=5 // pred_fallthru
        _
      %p321 = scmp.lt.s32.totalorder %s23, 3
      // Predicated region
      $region21: #{noisy_linear_forward.1} parent=5 // pred_check
        %p322 = pneg %p321
      $region22: #{noisy_linear_forward.1} parent=5 // pred_check_branch
        %324 = sbr.rel (%p322) target = $region24
      $region23: #{noisy_linear_forward.1} parent=5 // pred_region
        // Predicated region
        $region25: #{noisy_linear_forward.1} parent=23 // pred_check
          %p325 = pneg %p92
        $region26: #{noisy_linear_forward.1} parent=23 // pred_check_branch
          %327 = sbr.rel (%p325) target = $region28
        $region27: #{noisy_linear_forward.1} parent=23 // pred_region
          %s328 = sand.u32 %s82, 1
          %s329 = scalar_lea.sflag [#allocation3], %s328
          %s330 = sand.u32 %s82, 1
          %s331 = smul.addr %s330, 256
          %s332 = scalar_lea.vmem [#allocation2], %s331
          %s333 = smul.u32 32, %s32
          %335 = vsyncadd %s329, 0
          %s336 = smul.addr %s333, 3
          %s337 = sadd.s32 %s31, %s336
          %s338 = smul.addr %s337, 8
          %s339 = scalar_lea.hbm %s1, %s338
          %s340 = sshll.u32 %s339, 4
          %s341 = int_to_ptr.hbm [resolvable:$true] %s340
          %s342 = sshll.u32 %s332, 4
          %s343 = int_to_ptr.vmem [resolvable:$true] %s342
          %348 = dma.hbm_to_vmem [thread:$0]  %s341, 4096, %s343, %s329, 384, 128, 8
        $region28: #{noisy_linear_forward.1} parent=23 // pred_fallthru
          _
        // Predicated region
        $region29: #{noisy_linear_forward.1} parent=23 // pred_check
          %p349 = pneg %p120
        $region30: #{noisy_linear_forward.1} parent=23 // pred_check_branch
          %351 = sbr.rel (%p349) target = $region32
        $region31: #{noisy_linear_forward.1} parent=23 // pred_region
          %s352 = sand.u32 %s110, 1
          %s353 = scalar_lea.sflag [#allocation6], %s352
          %s354 = sand.u32 %s110, 1
          %s355 = smul.addr %s354, 256
          %s356 = scalar_lea.vmem [#allocation5], %s355
          %s357 = smul.u32 32, %s32
          %359 = vsyncadd %s353, 0
          %s360 = smul.addr %s357, 3
          %s361 = sadd.s32 %s31, %s360
          %s362 = smul.addr %s361, 8
          %s363 = scalar_lea.hbm %s2, %s362
          %s364 = sshll.u32 %s363, 4
          %s365 = int_to_ptr.hbm [resolvable:$true] %s364
          %s366 = sshll.u32 %s356, 4
          %s367 = int_to_ptr.vmem [resolvable:$true] %s366
          %372 = dma.hbm_to_vmem [thread:$0]  %s365, 4096, %s367, %s353, 384, 128, 8
        $region32: #{noisy_linear_forward.1} parent=23 // pred_fallthru
          _
        // Predicated region
        $region33: #{noisy_linear_forward.1} parent=23 // pred_check
          %p373 = pneg %p172
        $region34: #{noisy_linear_forward.1} parent=23 // pred_check_branch
          %375 = sbr.rel (%p373) target = $region36
        $region35: #{noisy_linear_forward.1} parent=23 // pred_region
          %p376 = scmp.lt.s32.totalorder %s31, 2
          %s377 = scalar_select %p376, %s31, 2
          %s378 = scalar_lea.vmem %s4, %s377
        $region36: #{noisy_linear_forward.1} parent=23 // pred_fallthru
          _
        // Predicated region
        $region37: #{noisy_linear_forward.1} parent=23 // pred_check
          %p379 = pneg %p198
        $region38: #{noisy_linear_forward.1} parent=23 // pred_check_branch
          %381 = sbr.rel (%p379) target = $region40
        $region39: #{noisy_linear_forward.1} parent=23 // pred_region
          %p382 = scmp.lt.s32.totalorder %s31, 2
          %s383 = scalar_select %p382, %s31, 2
          %s384 = scalar_lea.vmem %s5, %s383
        $region40: #{noisy_linear_forward.1} parent=23 // pred_fallthru
          _
        // Predicated region
        $region41: #{noisy_linear_forward.1} parent=23 // pred_check
          %p385 = pneg %p224
        $region42: #{noisy_linear_forward.1} parent=23 // pred_check_branch
          %387 = sbr.rel (%p385) target = $region44
        $region43: #{noisy_linear_forward.1} parent=23 // pred_region
          %p388 = scmp.lt.s32.totalorder %s31, 2
          %s389 = scalar_select %p388, %s31, 2
          %s390 = scalar_lea.vmem %s6, %s389
        $region44: #{noisy_linear_forward.1} parent=23 // pred_fallthru
          _
        // Predicated region
        $region45: #{noisy_linear_forward.1} parent=23 // pred_check
          %p391 = pneg %p250
        $region46: #{noisy_linear_forward.1} parent=23 // pred_check_branch
          %393 = sbr.rel (%p391) target = $region48
        $region47: #{noisy_linear_forward.1} parent=23 // pred_region
          %p394 = scmp.lt.s32.totalorder %s31, 2
          %s395 = scalar_select %p394, %s31, 2
          %s396 = scalar_lea.vmem %s7, %s395
        $region48: #{noisy_linear_forward.1} parent=23 // pred_fallthru
          _
      $region24: #{noisy_linear_forward.1} parent=5 // pred_fallthru
        _
      %p397 = scmp.le.s32.totalorder 1, %s23
      %p398 = scmp.lt.s32.totalorder %s23, 4
      %p399 = pnand %p397, %p398
      %p400 = pneg %p399
      // Predicated region
      $region49: #{noisy_linear_forward.1} parent=5 // pred_check
        _
      $region50: #{noisy_linear_forward.1} parent=5 // pred_check_branch
        %402 = sbr.rel (%p399) target = $region52
      $region51: #{noisy_linear_forward.1} parent=5 // pred_region
        %s403 = ssub.s32 %s23, 1
        %s404 = sand.u32 %s85, 1
        %s405 = scalar_lea.sflag [#allocation3], %s404
        %s406 = sand.u32 %s85, 1
        %s407 = smul.addr %s406, 256
        %s408 = scalar_lea.vmem [#allocation2], %s407
        // Predicated region
        $region53: #{noisy_linear_forward.1} parent=51 // pred_check
          %p409 = pneg %p98
        $region54: #{noisy_linear_forward.1} parent=51 // pred_check_branch
          %411 = sbr.rel (%p409) target = $region56
        $region55: #{noisy_linear_forward.1} parent=51 // pred_region
          %413 = dma.done %s405, 4096
        $region56: #{noisy_linear_forward.1} parent=51 // pred_fallthru
          _
        %s414 = sand.u32 %s113, 1
        %s415 = scalar_lea.sflag [#allocation6], %s414
        %s416 = sand.u32 %s113, 1
        %s417 = smul.addr %s416, 256
        %s418 = scalar_lea.vmem [#allocation5], %s417
        // Predicated region
        $region57: #{noisy_linear_forward.1} parent=51 // pred_check
          %p419 = pneg %p126
        $region58: #{noisy_linear_forward.1} parent=51 // pred_check_branch
          %421 = sbr.rel (%p419) target = $region60
        $region59: #{noisy_linear_forward.1} parent=51 // pred_region
          %423 = dma.done %s415, 4096
        $region60: #{noisy_linear_forward.1} parent=51 // pred_fallthru
          _
        %s424 = smul.u32 2, %s35
        %p425 = scmp.lt.s32.totalorder %s33, 0
        %s426 = scalar_select %p425, %s33, 0
        %p427 = scmp.lt.s32.totalorder %s424, 1
        %s428 = scalar_select %p427, %s424, 1
        %s429 = smul.addr %s426, 2
        %s430 = sadd.s32 %s428, %s429
        %s431 = smul.addr %s430, 8
        %s432 = scalar_lea.vmem %s0, %s431
        %p433 = pneg %p70
        %p434 = pneg %p67
        %s435 = sand.u32 %s85, 1
        %s436 = scalar_lea.sflag [#allocation3], %s435
        %s437 = sand.u32 %s85, 1
        %s438 = smul.addr %s437, 256
        %s439 = scalar_lea.vmem [#allocation2], %s438
        %p440 = pneg %p98
        %p441 = pneg %p95
        %s442 = sand.u32 %s113, 1
        %s443 = scalar_lea.sflag [#allocation6], %s442
        %s444 = sand.u32 %s113, 1
        %s445 = smul.addr %s444, 256
        %s446 = scalar_lea.vmem [#allocation5], %s445
        %p447 = pneg %p126
        %p448 = pneg %p123
        %s449 = smul.u32 32, %s35
        %p450 = scmp.lt.s32.totalorder %s449, 31
        %s451 = scalar_select %p450, %s449, 31
        %s452 = smul.addr %s451, 8
        %s453 = scalar_lea.vmem %s3, %s452
        %p454 = pneg %p152
        %p455 = pneg %p149
        %p456 = scmp.lt.s32.totalorder %s34, 2
        %s457 = scalar_select %p456, %s34, 2
        %s458 = scalar_lea.vmem %s4, %s457
        %p459 = pneg %p178
        %p460 = pneg %p175
        %p461 = scmp.lt.s32.totalorder %s34, 2
        %s462 = scalar_select %p461, %s34, 2
        %s463 = scalar_lea.vmem %s5, %s462
        %p464 = pneg %p204
        %p465 = pneg %p201
        %p466 = scmp.lt.s32.totalorder %s34, 2
        %s467 = scalar_select %p466, %s34, 2
        %s468 = scalar_lea.vmem %s6, %s467
        %p469 = pneg %p230
        %p470 = pneg %p227
        %p471 = scmp.lt.s32.totalorder %s34, 2
        %s472 = scalar_select %p471, %s34, 2
        %s473 = scalar_lea.vmem %s7, %s472
        %p474 = pneg %p256
        %p475 = pneg %p253
        %p476 = pneg %p284
        %p477 = pneg %p281
        %s478 = sand.u32 %s271, 1
        %s479 = scalar_lea.sflag [#allocation4], %s478
        %s480 = sand.u32 %s271, 1
        %s481 = smul.addr %s480, 8
        %s482 = scalar_lea.vmem [#allocation7], %s481
        %s483 = smul.u32 2, %s35
        %p484 = scmp.lt.s32.totalorder %s33, 0
        %s485 = scalar_select %p484, %s33, 0
        %p486 = scmp.lt.s32.totalorder %s483, 1
        %s487 = scalar_select %p486, %s483, 1
        %s488 = smul.addr %s485, 2
        %s489 = sadd.s32 %s487, %s488
        %s490 = smul.addr %s489, 8
        %s491 = scalar_lea.vmem %s0, %s490
        %s492 = smul.u32 2, %s35
        %s493 = smul.u32 32, %s35
        %s494 = smul.u32 32, %s35
        %s495 = smul.u32 32, %s35
        %p496 = scmp.lt.s32.totalorder %s495, 31
        %s497 = scalar_select %p496, %s495, 31
        %s498 = smul.addr %s497, 8
        %s499 = scalar_lea.vmem %s3, %s498
        %s500 = smul.u32 32, %s35
        %p501 = scmp.lt.s32.totalorder %s34, 2
        %s502 = scalar_select %p501, %s34, 2
        %s503 = scalar_lea.vmem %s4, %s502
        %p504 = scmp.lt.s32.totalorder %s34, 2
        %s505 = scalar_select %p504, %s34, 2
        %s506 = scalar_lea.vmem %s5, %s505
        %p507 = scmp.lt.s32.totalorder %s34, 2
        %s508 = scalar_select %p507, %s34, 2
        %s509 = scalar_lea.vmem %s6, %s508
        %p510 = scmp.lt.s32.totalorder %s34, 2
        %s511 = scalar_select %p510, %s34, 2
        %s512 = scalar_lea.vmem %s7, %s511
        %p513 = scmp.eq.s32.totalorder %s35, 0
        // Predicated region
        $region61: #{noisy_linear_forward.1} parent=51 // pred_check
          %p514 = pneg %p513
        $region62: #{noisy_linear_forward.1} parent=51 // pred_check_branch
          %516 = sbr.rel (%p514) target = $region64
        $region63: #{noisy_linear_forward.1} parent=51 // pred_region
          %517 = vst [vmem:[%s482] sm:$0xff] 0.0
        $region64: #{noisy_linear_forward.1} parent=51 // pred_fallthru
          _
        %v518 = vld [vmem:[%s408] sm:$0xff]
        %v519 = vld [vmem:[%s408 + $0x8] sm:$0xff]
        %v520 = vld [vmem:[%s408 + $0x10] sm:$0xff]
        %v521 = vld [vmem:[%s408 + $0x18] sm:$0xff]
        %v522 = vld [vmem:[%s408 + $0x20] sm:$0xff]
        %v523 = vld [vmem:[%s408 + $0x28] sm:$0xff]
        %v524 = vld [vmem:[%s408 + $0x30] sm:$0xff]
        %v525 = vld [vmem:[%s408 + $0x38] sm:$0xff]
        %v526 = vld [vmem:[%s408 + $0x40] sm:$0xff]
        %v527 = vld [vmem:[%s408 + $0x48] sm:$0xff]
        %v528 = vld [vmem:[%s408 + $0x50] sm:$0xff]
        %v529 = vld [vmem:[%s408 + $0x58] sm:$0xff]
        %v530 = vld [vmem:[%s408 + $0x60] sm:$0xff]
        %v531 = vld [vmem:[%s408 + $0x68] sm:$0xff]
        %v532 = vld [vmem:[%s408 + $0x70] sm:$0xff]
        %v533 = vld [vmem:[%s408 + $0x78] sm:$0xff]
        %v534 = vld [vmem:[%s408 + $0x80] sm:$0xff]
        %v535 = vld [vmem:[%s408 + $0x88] sm:$0xff]
        %v536 = vld [vmem:[%s408 + $0x90] sm:$0xff]
        %v537 = vld [vmem:[%s408 + $0x98] sm:$0xff]
        %v538 = vld [vmem:[%s408 + $0xa0] sm:$0xff]
        %v539 = vld [vmem:[%s408 + $0xa8] sm:$0xff]
        %v540 = vld [vmem:[%s408 + $0xb0] sm:$0xff]
        %v541 = vld [vmem:[%s408 + $0xb8] sm:$0xff]
        %v542 = vld [vmem:[%s408 + $0xc0] sm:$0xff]
        %v543 = vld [vmem:[%s408 + $0xc8] sm:$0xff]
        %v544 = vld [vmem:[%s408 + $0xd0] sm:$0xff]
        %v545 = vld [vmem:[%s408 + $0xd8] sm:$0xff]
        %v546 = vld [vmem:[%s408 + $0xe0] sm:$0xff]
        %v547 = vld [vmem:[%s408 + $0xe8] sm:$0xff]
        %v548 = vld [vmem:[%s408 + $0xf0] sm:$0xff]
        %v549 = vld [vmem:[%s408 + $0xf8] sm:$0xff]
        %v550 = vld [vmem:[%s418] sm:$0xff]
        %v551 = vld [vmem:[%s418 + $0x8] sm:$0xff]
        %v552 = vld [vmem:[%s418 + $0x10] sm:$0xff]
        %v553 = vld [vmem:[%s418 + $0x18] sm:$0xff]
        %v554 = vld [vmem:[%s418 + $0x20] sm:$0xff]
        %v555 = vld [vmem:[%s418 + $0x28] sm:$0xff]
        %v556 = vld [vmem:[%s418 + $0x30] sm:$0xff]
        %v557 = vld [vmem:[%s418 + $0x38] sm:$0xff]
        %v558 = vld [vmem:[%s418 + $0x40] sm:$0xff]
        %v559 = vld [vmem:[%s418 + $0x48] sm:$0xff]
        %v560 = vld [vmem:[%s418 + $0x50] sm:$0xff]
        %v561 = vld [vmem:[%s418 + $0x58] sm:$0xff]
        %v562 = vld [vmem:[%s418 + $0x60] sm:$0xff]
        %v563 = vld [vmem:[%s418 + $0x68] sm:$0xff]
        %v564 = vld [vmem:[%s418 + $0x70] sm:$0xff]
        %v565 = vld [vmem:[%s418 + $0x78] sm:$0xff]
        %v566 = vld [vmem:[%s418 + $0x80] sm:$0xff]
        %v567 = vld [vmem:[%s418 + $0x88] sm:$0xff]
        %v568 = vld [vmem:[%s418 + $0x90] sm:$0xff]
        %v569 = vld [vmem:[%s418 + $0x98] sm:$0xff]
        %v570 = vld [vmem:[%s418 + $0xa0] sm:$0xff]
        %v571 = vld [vmem:[%s418 + $0xa8] sm:$0xff]
        %v572 = vld [vmem:[%s418 + $0xb0] sm:$0xff]
        %v573 = vld [vmem:[%s418 + $0xb8] sm:$0xff]
        %v574 = vld [vmem:[%s418 + $0xc0] sm:$0xff]
        %v575 = vld [vmem:[%s418 + $0xc8] sm:$0xff]
        %v576 = vld [vmem:[%s418 + $0xd0] sm:$0xff]
        %v577 = vld [vmem:[%s418 + $0xd8] sm:$0xff]
        %v578 = vld [vmem:[%s418 + $0xe0] sm:$0xff]
        %v579 = vld [vmem:[%s418 + $0xe8] sm:$0xff]
        %v580 = vld [vmem:[%s418 + $0xf0] sm:$0xff]
        %v581 = vld [vmem:[%s418 + $0xf8] sm:$0xff]
        %v582 = vld [vmem:[%s499] sm:$0xff]
        %v583 = vld [vmem:[%s499 + $0x8] sm:$0xff]
        %v584 = vld [vmem:[%s499 + $0x10] sm:$0xff]
        %v585 = vld [vmem:[%s499 + $0x18] sm:$0xff]
        %v586 = vld [vmem:[%s499 + $0x20] sm:$0xff]
        %v587 = vld [vmem:[%s499 + $0x28] sm:$0xff]
        %v588 = vld [vmem:[%s499 + $0x30] sm:$0xff]
        %v589 = vld [vmem:[%s499 + $0x38] sm:$0xff]
        %v590 = vld [vmem:[%s499 + $0x40] sm:$0xff]
        %v591 = vld [vmem:[%s499 + $0x48] sm:$0xff]
        %v592 = vld [vmem:[%s499 + $0x50] sm:$0xff]
        %v593 = vld [vmem:[%s499 + $0x58] sm:$0xff]
        %v594 = vld [vmem:[%s499 + $0x60] sm:$0xff]
        %v595 = vld [vmem:[%s499 + $0x68] sm:$0xff]
        %v596 = vld [vmem:[%s499 + $0x70] sm:$0xff]
        %v597 = vld [vmem:[%s499 + $0x78] sm:$0xff]
        %v598 = vld [vmem:[%s499 + $0x80] sm:$0xff]
        %v599 = vld [vmem:[%s499 + $0x88] sm:$0xff]
        %v600 = vld [vmem:[%s499 + $0x90] sm:$0xff]
        %v601 = vld [vmem:[%s499 + $0x98] sm:$0xff]
        %v602 = vld [vmem:[%s499 + $0xa0] sm:$0xff]
        %v603 = vld [vmem:[%s499 + $0xa8] sm:$0xff]
        %v604 = vld [vmem:[%s499 + $0xb0] sm:$0xff]
        %v605 = vld [vmem:[%s499 + $0xb8] sm:$0xff]
        %v606 = vld [vmem:[%s499 + $0xc0] sm:$0xff]
        %v607 = vld [vmem:[%s499 + $0xc8] sm:$0xff]
        %v608 = vld [vmem:[%s499 + $0xd0] sm:$0xff]
        %v609 = vld [vmem:[%s499 + $0xd8] sm:$0xff]
        %v610 = vld [vmem:[%s499 + $0xe0] sm:$0xff]
        %v611 = vld [vmem:[%s499 + $0xe8] sm:$0xff]
        %v612 = vld [vmem:[%s499 + $0xf0] sm:$0xff]
        %v613 = vld [vmem:[%s499 + $0xf8] sm:$0xff]
        %v614 = vld [vmem:[%s503] sm:$0x1]
        %616 = vset.pattern.permute.xlu0 0
        %617 = vperm.xlu0 %616, %v582
        %v618 = vpop.permute.xlu0 %617
        %621 = vset.pattern.permute.xlu0 0
        %622 = vperm.xlu0 %621, %v583
        %v623 = vpop.permute.xlu0 %622
        %626 = vset.pattern.permute.xlu0 0
        %627 = vperm.xlu0 %626, %v584
        %v628 = vpop.permute.xlu0 %627
        %631 = vset.pattern.permute.xlu0 0
        %632 = vperm.xlu0 %631, %v585
        %v633 = vpop.permute.xlu0 %632
        %636 = vset.pattern.permute.xlu0 0
        %637 = vperm.xlu0 %636, %v586
        %v638 = vpop.permute.xlu0 %637
        %641 = vset.pattern.permute.xlu0 0
        %642 = vperm.xlu0 %641, %v587
        %v643 = vpop.permute.xlu0 %642
        %646 = vset.pattern.permute.xlu0 0
        %647 = vperm.xlu0 %646, %v588
        %v648 = vpop.permute.xlu0 %647
        %651 = vset.pattern.permute.xlu0 0
        %652 = vperm.xlu0 %651, %v589
        %v653 = vpop.permute.xlu0 %652
        %656 = vset.pattern.permute.xlu0 0
        %657 = vperm.xlu0 %656, %v590
        %v658 = vpop.permute.xlu0 %657
        %661 = vset.pattern.permute.xlu0 0
        %662 = vperm.xlu0 %661, %v591
        %v663 = vpop.permute.xlu0 %662
        %666 = vset.pattern.permute.xlu0 0
        %667 = vperm.xlu0 %666, %v592
        %v668 = vpop.permute.xlu0 %667
        %671 = vset.pattern.permute.xlu0 0
        %672 = vperm.xlu0 %671, %v593
        %v673 = vpop.permute.xlu0 %672
        %676 = vset.pattern.permute.xlu0 0
        %677 = vperm.xlu0 %676, %v594
        %v678 = vpop.permute.xlu0 %677
        %681 = vset.pattern.permute.xlu0 0
        %682 = vperm.xlu0 %681, %v595
        %v683 = vpop.permute.xlu0 %682
        %686 = vset.pattern.permute.xlu0 0
        %687 = vperm.xlu0 %686, %v596
        %v688 = vpop.permute.xlu0 %687
        %691 = vset.pattern.permute.xlu0 0
        %692 = vperm.xlu0 %691, %v597
        %v693 = vpop.permute.xlu0 %692
        %696 = vset.pattern.permute.xlu0 0
        %697 = vperm.xlu0 %696, %v598
        %v698 = vpop.permute.xlu0 %697
        %701 = vset.pattern.permute.xlu0 0
        %702 = vperm.xlu0 %701, %v599
        %v703 = vpop.permute.xlu0 %702
        %706 = vset.pattern.permute.xlu0 0
        %707 = vperm.xlu0 %706, %v600
        %v708 = vpop.permute.xlu0 %707
        %711 = vset.pattern.permute.xlu0 0
        %712 = vperm.xlu0 %711, %v601
        %v713 = vpop.permute.xlu0 %712
        %716 = vset.pattern.permute.xlu0 0
        %717 = vperm.xlu0 %716, %v602
        %v718 = vpop.permute.xlu0 %717
        %721 = vset.pattern.permute.xlu0 0
        %722 = vperm.xlu0 %721, %v603
        %v723 = vpop.permute.xlu0 %722
        %726 = vset.pattern.permute.xlu0 0
        %727 = vperm.xlu0 %726, %v604
        %v728 = vpop.permute.xlu0 %727
        %731 = vset.pattern.permute.xlu0 0
        %732 = vperm.xlu0 %731, %v605
        %v733 = vpop.permute.xlu0 %732
        %736 = vset.pattern.permute.xlu0 0
        %737 = vperm.xlu0 %736, %v606
        %v738 = vpop.permute.xlu0 %737
        %741 = vset.pattern.permute.xlu0 0
        %742 = vperm.xlu0 %741, %v607
        %v743 = vpop.permute.xlu0 %742
        %746 = vset.pattern.permute.xlu0 0
        %747 = vperm.xlu0 %746, %v608
        %v748 = vpop.permute.xlu0 %747
        %751 = vset.pattern.permute.xlu0 0
        %752 = vperm.xlu0 %751, %v609
        %v753 = vpop.permute.xlu0 %752
        %756 = vset.pattern.permute.xlu0 0
        %757 = vperm.xlu0 %756, %v610
        %v758 = vpop.permute.xlu0 %757
        %761 = vset.pattern.permute.xlu0 0
        %762 = vperm.xlu0 %761, %v611
        %v763 = vpop.permute.xlu0 %762
        %766 = vset.pattern.permute.xlu0 0
        %767 = vperm.xlu0 %766, %v612
        %v768 = vpop.permute.xlu0 %767
        %771 = vset.pattern.permute.xlu0 0
        %772 = vperm.xlu0 %771, %v613
        %v773 = vpop.permute.xlu0 %772
        %v776 = vperm.slane %v614, 0
        %v778 = vmul.f32 %v618, %v776
        %v779 = vmul.f32 %v623, %v776
        %v780 = vmul.f32 %v628, %v776
        %v781 = vmul.f32 %v633, %v776
        %v782 = vmul.f32 %v638, %v776
        %v783 = vmul.f32 %v643, %v776
        %v784 = vmul.f32 %v648, %v776
        %v785 = vmul.f32 %v653, %v776
        %v786 = vmul.f32 %v658, %v776
        %v787 = vmul.f32 %v663, %v776
        %v788 = vmul.f32 %v668, %v776
        %v789 = vmul.f32 %v673, %v776
        %v790 = vmul.f32 %v678, %v776
        %v791 = vmul.f32 %v683, %v776
        %v792 = vmul.f32 %v688, %v776
        %v793 = vmul.f32 %v693, %v776
        %v794 = vmul.f32 %v698, %v776
        %v795 = vmul.f32 %v703, %v776
        %v796 = vmul.f32 %v708, %v776
        %v797 = vmul.f32 %v713, %v776
        %v798 = vmul.f32 %v718, %v776
        %v799 = vmul.f32 %v723, %v776
        %v800 = vmul.f32 %v728, %v776
        %v801 = vmul.f32 %v733, %v776
        %v802 = vmul.f32 %v738, %v776
        %v803 = vmul.f32 %v743, %v776
        %v804 = vmul.f32 %v748, %v776
        %v805 = vmul.f32 %v753, %v776
        %v806 = vmul.f32 %v758, %v776
        %v807 = vmul.f32 %v763, %v776
        %v808 = vmul.f32 %v768, %v776
        %v809 = vmul.f32 %v773, %v776
        %v810 = vmul.f32 %v550, %v778
        %v811 = vmul.f32 %v551, %v779
        %v812 = vmul.f32 %v552, %v780
        %v813 = vmul.f32 %v553, %v781
        %v814 = vmul.f32 %v554, %v782
        %v815 = vmul.f32 %v555, %v783
        %v816 = vmul.f32 %v556, %v784
        %v817 = vmul.f32 %v557, %v785
        %v818 = vmul.f32 %v558, %v786
        %v819 = vmul.f32 %v559, %v787
        %v820 = vmul.f32 %v560, %v788
        %v821 = vmul.f32 %v561, %v789
        %v822 = vmul.f32 %v562, %v790
        %v823 = vmul.f32 %v563, %v791
        %v824 = vmul.f32 %v564, %v792
        %v825 = vmul.f32 %v565, %v793
        %v826 = vmul.f32 %v566, %v794
        %v827 = vmul.f32 %v567, %v795
        %v828 = vmul.f32 %v568, %v796
        %v829 = vmul.f32 %v569, %v797
        %v830 = vmul.f32 %v570, %v798
        %v831 = vmul.f32 %v571, %v799
        %v832 = vmul.f32 %v572, %v800
        %v833 = vmul.f32 %v573, %v801
        %v834 = vmul.f32 %v574, %v802
        %v835 = vmul.f32 %v575, %v803
        %v836 = vmul.f32 %v576, %v804
        %v837 = vmul.f32 %v577, %v805
        %v838 = vmul.f32 %v578, %v806
        %v839 = vmul.f32 %v579, %v807
        %v840 = vmul.f32 %v580, %v808
        %v841 = vmul.f32 %v581, %v809
        %v842 = vadd.f32 %v518, %v810
        %v843 = vadd.f32 %v519, %v811
        %v844 = vadd.f32 %v520, %v812
        %v845 = vadd.f32 %v521, %v813
        %v846 = vadd.f32 %v522, %v814
        %v847 = vadd.f32 %v523, %v815
        %v848 = vadd.f32 %v524, %v816
        %v849 = vadd.f32 %v525, %v817
        %v850 = vadd.f32 %v526, %v818
        %v851 = vadd.f32 %v527, %v819
        %v852 = vadd.f32 %v528, %v820
        %v853 = vadd.f32 %v529, %v821
        %v854 = vadd.f32 %v530, %v822
        %v855 = vadd.f32 %v531, %v823
        %v856 = vadd.f32 %v532, %v824
        %v857 = vadd.f32 %v533, %v825
        %v858 = vadd.f32 %v534, %v826
        %v859 = vadd.f32 %v535, %v827
        %v860 = vadd.f32 %v536, %v828
        %v861 = vadd.f32 %v537, %v829
        %v862 = vadd.f32 %v538, %v830
        %v863 = vadd.f32 %v539, %v831
        %v864 = vadd.f32 %v540, %v832
        %v865 = vadd.f32 %v541, %v833
        %v866 = vadd.f32 %v542, %v834
        %v867 = vadd.f32 %v543, %v835
        %v868 = vadd.f32 %v544, %v836
        %v869 = vadd.f32 %v545, %v837
        %v870 = vadd.f32 %v546, %v838
        %v871 = vadd.f32 %v547, %v839
        %v872 = vadd.f32 %v548, %v840
        %v873 = vadd.f32 %v549, %v841
        %v874 = vld [vmem:[%s491] sm:$0xff]
        %v875 = vld [vmem:[%s491 + $0x8] sm:$0xff]
        %v876 = vld [vmem:[%s482] sm:$0xff]
        %877 = vmatpush.msra.mxu0 %v857
        %878 = vmatpush.msra.mxu0 %v856
        %879 = vmatpush.msra.mxu0 %v855
        %880 = vmatpush.msra.mxu0 %v854
        %881 = vmatpush.msra.mxu0 %v853
        %882 = vmatpush.msra.mxu0 %v852
        %883 = vmatpush.msra.mxu0 %v851
        %884 = vmatpush.msra.mxu0 %v850
        %885 = vmatpush.msra.mxu0 %v849
        %886 = vmatpush.msra.mxu0 %v848
        %887 = vmatpush.msra.mxu0 %v847
        %888 = vmatpush.msra.mxu0 %v846
        %889 = vmatpush.msra.mxu0 %v845
        %890 = vmatpush.msra.mxu0 %v844
        %891 = vmatpush.msra.mxu0 %v843
        %892 = vmatpush.msra.mxu0 %v842
        %893 = vmatmul.f32.gmra.mxu0 %v874
        %v894 = vpop.f32.mrf.mxu0
        %v895 = vadd.f32 0.0, %v894
        %896 = vdwg.mxu0
        %897 = vmatpush.msra.mxu0 %v873
        %898 = vmatpush.msra.mxu0 %v872
        %899 = vmatpush.msra.mxu0 %v871
        %900 = vmatpush.msra.mxu0 %v870
        %901 = vmatpush.msra.mxu0 %v869
        %902 = vmatpush.msra.mxu0 %v868
        %903 = vmatpush.msra.mxu0 %v867
        %904 = vmatpush.msra.mxu0 %v866
        %905 = vmatpush.msra.mxu0 %v865
        %906 = vmatpush.msra.mxu0 %v864
        %907 = vmatpush.msra.mxu0 %v863
        %908 = vmatpush.msra.mxu0 %v862
        %909 = vmatpush.msra.mxu0 %v861
        %910 = vmatpush.msra.mxu0 %v860
        %911 = vmatpush.msra.mxu0 %v859
        %912 = vmatpush.msra.mxu0 %v858
        %913 = vmatmul.f32.gmra.mxu0 %v875
        %v914 = vpop.f32.mrf.mxu0
        %v915 = vadd.f32 %v895, %v914
        %916 = vdwg.mxu0
        %v917 = vadd.f32 %v876, %v915
        %918 = vst [vmem:[%s482] sm:$0xff] %v917
        // Predicated region
        $region65: #{noisy_linear_forward.1} parent=51 // pred_check
          %p919 = pneg %p513
        $region66: #{noisy_linear_forward.1} parent=51 // pred_check_branch
          %921 = sbr.rel (%p919) target = $region68
        $region67: #{noisy_linear_forward.1} parent=51 // pred_region
          %v922 = vld [vmem:[%s482] sm:$0xff]
          %v923 = vld [vmem:[%s506] sm:$0x1]
          %v924 = vld [vmem:[%s509] sm:$0x1]
          %v925 = vld [vmem:[%s512] sm:$0x1]
          %v926 = vmul.f32 %v924, %v925
          %v927 = vadd.f32 %v923, %v926
          %v929 = vperm.slane %v927, 0
          %v931 = vadd.f32 %v922, %v929
          %932 = vst [vmem:[%s482] sm:$0xff] %v931
        $region68: #{noisy_linear_forward.1} parent=51 // pred_fallthru
          _
        %s933 = sand.u32 %s271, 1
        %s934 = scalar_lea.sflag [#allocation4], %s933
        %s935 = sand.u32 %s271, 1
        %s936 = smul.addr %s935, 8
        %s937 = scalar_lea.vmem [#allocation7], %s936
        // Predicated region
        $region69: #{noisy_linear_forward.1} parent=51 // pred_check
          %p938 = pneg %p281
        $region70: #{noisy_linear_forward.1} parent=51 // pred_check_branch
          %940 = sbr.rel (%p938) target = $region72
        $region71: #{noisy_linear_forward.1} parent=51 // pred_region
          %942 = vsyncadd %s934, 0
          %s943 = smul.addr %s33, 3
          %s944 = sadd.s32 %s34, %s943
          %s945 = smul.addr %s944, 8
          %s946 = scalar_lea.hbm %s8, %s945
          %s948 = sshll.u32 %s937, 4
          %s949 = int_to_ptr.vmem [resolvable:$true] %s948
          %s950 = sshll.u32 %s946, 4
          %s951 = int_to_ptr.hbm [resolvable:$true] %s950
          %953 = dma.vmem_to_hbm [thread:$0]  %s949, 128, %s951, %s934
        $region72: #{noisy_linear_forward.1} parent=51 // pred_fallthru
          _
      $region52: #{noisy_linear_forward.1} parent=5 // pred_fallthru
        _
      %p954 = scmp.le.s32.totalorder 2, %s23
      // Predicated region
      $region73: #{noisy_linear_forward.1} parent=5 // pred_check
        %p955 = pneg %p954
      $region74: #{noisy_linear_forward.1} parent=5 // pred_check_branch
        %957 = sbr.rel (%p955) target = $region76
      $region75: #{noisy_linear_forward.1} parent=5 // pred_region
        %s958 = ssub.s32 %s23, 2
        // Predicated region
        $region77: #{noisy_linear_forward.1} parent=75 // pred_check
          %p959 = pneg %p287
        $region78: #{noisy_linear_forward.1} parent=75 // pred_check_branch
          %961 = sbr.rel (%p959) target = $region80
        $region79: #{noisy_linear_forward.1} parent=75 // pred_region
          %s962 = sand.u32 %s272, 1
          %s963 = scalar_lea.sflag [#allocation4], %s962
          %s964 = sand.u32 %s272, 1
          %s965 = smul.addr %s964, 8
          %s966 = scalar_lea.vmem [#allocation7], %s965
          %968 = dma.done %s963, 128
        $region80: #{noisy_linear_forward.1} parent=75 // pred_fallthru
          _
      $region76: #{noisy_linear_forward.1} parent=5 // pred_fallthru
        _
    $region6: #{noisy_linear_forward.1} parent=1 // loop_footer
      %s27 = sadd.s32 1, %s23
    $region7: #{noisy_linear_forward.1} parent=1 // loop_footer_branch
      %22 = sbr.rel target = $region3
    $region8: #{noisy_linear_forward.1} parent=1 // loop_exit
      _
    %969 = vsyncpa [#allocation3], 1
    %s970 = scalar_lea.sflag [#allocation3], 1
    %971 = vsyncpa %s970, 1
    %972 = vsyncpa [#allocation6], 1
    %s973 = scalar_lea.sflag [#allocation6], 1
    %974 = vsyncpa %s973, 1
    %975 = vsyncpa [#allocation4], 1
    %s976 = scalar_lea.sflag [#allocation4], 1
    %977 = vsyncpa %s976, 1

</llo_original>
